<compile_context>
chip_gen: v5e
topology: v5e:2x2
jax: 0.10.0
libtpu: 0.0.40
codegen_flags: <defaults>
</compile_context>

<pallas_src>
import functools

import jax
import jax.numpy as jnp
from jax.experimental import pallas as pl
from jax.experimental.pallas import tpu as pltpu


def skip_block_kernel(x_ref, w1_ref, w2_ref, gamma_ref, beta_ref, s_ref, out_ref,
                      *, N, H, W, eps):
    """SkipBlock forward, fully VMEM-resident, lane-packed (row=(n,h), lane=w*C+c).

    x_ref    : (N, H, W*C)      f32  packed input (also the residual identity)
    w1_ref   : (3*W*C, W*C)     bf16 conv1 banded weight (dy-major, then w*C+ci rows)
    w2_ref   : (3*W*C, W*C)     bf16 conv2 banded weight
    gamma_ref: (1, W*C)         f32  BN scale, tiled per lane group
    beta_ref : (1, W*C)         f32  BN shift, tiled per lane group
    s_ref    : (W*C, W*C)       f32  0/1 channel fold+broadcast matrix
    out_ref  : (N, H, W*C)      f32  packed output
    """
    WC = x_ref.shape[2]
    NH = N * H
    inv_nhw = 1.0 / float(N * H * W)

    gamma = gamma_ref[...]                      # (1, WC)
    beta = beta_ref[...]                        # (1, WC)
    fold = s_ref[...]                           # (WC, WC)
    x = x_ref[...]                              # (N, H, WC) f32

    def conv3x3(act_bf16, w_ref):
        # act_bf16: (N, H, WC) bf16 -> (NH, WC) f32.
        # dy taps: two zero halo rows + three H-row windows (small register copies);
        # dx taps and the W-boundary zeros live inside the banded weight matrix.
        zrow = jnp.zeros((N, 1, WC), jnp.bfloat16)
        xp = jnp.concatenate([zrow, act_bf16, zrow], axis=1)          # (N, H+2, WC)
        patches = jnp.concatenate(
            [xp[:, 0:H, :], xp[:, 1:H + 1, :], xp[:, 2:H + 2, :]],
            axis=-1)                                                  # (N, H, 3*WC) bf16
        return jnp.dot(patches.reshape(NH, 3 * WC), w_ref[...],
                       preferred_element_type=jnp.float32)            # (NH, WC) f32

    def bn_scale_shift(y):
        # Train-mode BatchNorm2d folded into per-lane scale/shift, single pass:
        # sum and sum-of-squares in f32, var = E[x^2] - E[x]^2.  The fold over the W
        # lane groups (and broadcast back to every group) is one exact 0/1 matmul.
        stats = jnp.concatenate([y, y * y], axis=0)                   # (2*NH, WC)
        folded = jnp.dot(stats, fold,
                         preferred_element_type=jnp.float32)          # (2*NH, WC)
        mean = jnp.sum(folded[:NH], axis=0, keepdims=True) * inv_nhw  # (1, WC)
        ex2 = jnp.sum(folded[NH:], axis=0, keepdims=True) * inv_nhw   # (1, WC)
        var = ex2 - mean * mean                                       # biased variance
        scale = gamma * jax.lax.rsqrt(var + eps)
        shift = beta - mean * scale
        return scale, shift

    # ---- conv1 (one bf16 MXU matmul) + BN ----------------------------------------
    y1 = conv3x3(x.astype(jnp.bfloat16), w1_ref)                      # cast x once
    s1, b1 = bn_scale_shift(y1)
    y1 = y1 * s1 + b1

    # ---- conv2 + BN (same BN params; batch stats of its own input) ---------------
    y2 = conv3x3(y1.astype(jnp.bfloat16).reshape(N, H, WC), w2_ref)   # cast y1 once
    s2, b2 = bn_scale_shift(y2)

    # ---- fused BN2 apply + skip connection + ReLU, full-lane store ---------------
    out = jnp.maximum(y2 * s2 + b2 + x.reshape(NH, WC), 0.0)
    out_ref[...] = out.reshape(N, H, WC)


def _band_conv_weights(w_hwio, W):
    """(3, 3, Cin, Cout) HWIO -> (3*W*Cin, W*Cout) block-banded matrix.

    Row index = dy*(W*Cin) + w*Cin + ci, col index = v*Cout + co, entry
    w[dy, w - v + 1, ci, co] when 0 <= w - v + 1 < 3 else 0 — so one matmul against
    the lane-packed row windows performs all 9 taps and zero-pads the W boundary.
    """
    kh, kw, cin, cout = w_hwio.shape
    v = jnp.arange(W)
    off = v[:, None] - v[None, :] + 1                     # off[w, v] = w - v + 1
    valid = (off >= 0) & (off < kw)
    offc = jnp.clip(off, 0, kw - 1)
    band = w_hwio[:, offc, :, :]                          # (3, W, W, Cin, Cout)
    band = band * valid[None, :, :, None, None].astype(w_hwio.dtype)
    band = jnp.transpose(band, (0, 1, 3, 2, 4))           # (3, W, Cin, W, Cout)
    return band.reshape(kh * W * cin, W * cout)


def _channel_fold_matrix(W, C):
    """S[w*C+c, v*C+c'] = 1 iff c == c' (exact 0/1): folds per-channel sums over the
    W lane groups and broadcasts them back to every group in a single matmul."""
    return jnp.tile(jnp.eye(C, dtype=jnp.float32), (W, W))


def skip_block_forward(x_nhwc, w1_hwio, w2_hwio, gamma, beta, eps=1e-5):
    """x_nhwc: (N, H, W, C) f32; w1/w2: (3, 3, C, C) HWIO; gamma/beta: (C,)."""
    N, H, W, C = x_nhwc.shape
    assert w1_hwio.shape == (3, 3, C, C) and w2_hwio.shape == (3, 3, C, C), \
        "residual add requires in_channels == out_channels"
    WC = W * C
    NH = N * H
    assert WC % 128 == 0, "pick W*C as a multiple of 128 for lane-dense packing"

    # Lane-dense packed layout: pure reshape (no transpose / extra HBM pass).
    x_packed = x_nhwc.reshape(N, H, WC).astype(jnp.float32)
    w1b = _band_conv_weights(w1_hwio.astype(jnp.float32), W).astype(jnp.bfloat16)
    w2b = _band_conv_weights(w2_hwio.astype(jnp.float32), W).astype(jnp.bfloat16)
    gamma_t = jnp.tile(gamma.reshape(1, C).astype(jnp.float32), (1, W))   # lane w*C+c -> gamma[c]
    beta_t = jnp.tile(beta.reshape(1, C).astype(jnp.float32), (1, W))
    s_mat = _channel_fold_matrix(W, C)

    # VMEM footprint: x2 for BlockSpec double-buffering of every in/out tile
    # (grid=(1,) so the second buffer is pure overhead, but it still gets allocated),
    # plus headroom for register/VMEM temporaries (patch matrices, f32 intermediates).
    bytes_in = (x_packed.size * 4 + w1b.size * 2 + w2b.size * 2
                + gamma_t.size * 4 + beta_t.size * 4 + s_mat.size * 4)
    bytes_out = N * H * WC * 4
    bytes_tmp = 2 * (NH * 3 * WC * 2) + 8 * (NH * WC * 4)
    vmem_estimate = 2 * (bytes_in + bytes_out) + bytes_tmp
    vmem_limit = 32 * 1024 * 1024            # safe cap on every generation (v7x: 64 MiB physical)
    assert vmem_estimate < vmem_limit // 2, vmem_estimate

    kernel = functools.partial(skip_block_kernel, N=N, H=H, W=W, eps=eps)

    out_packed = pl.pallas_call(
        kernel,
        out_shape=jax.ShapeDtypeStruct((N, H, WC), jnp.float32),
        grid=(1,),
        in_specs=[
            pl.BlockSpec((N, H, WC), lambda i: (0, 0, 0)),
            pl.BlockSpec((3 * WC, WC), lambda i: (0, 0)),
            pl.BlockSpec((3 * WC, WC), lambda i: (0, 0)),
            pl.BlockSpec((1, WC), lambda i: (0, 0)),
            pl.BlockSpec((1, WC), lambda i: (0, 0)),
            pl.BlockSpec((WC, WC), lambda i: (0, 0)),
        ],
        out_specs=pl.BlockSpec((N, H, WC), lambda i: (0, 0, 0)),
        compiler_params=pltpu.CompilerParams(
            dimension_semantics=("arbitrary",),
            vmem_limit_bytes=vmem_limit),
    )(x_packed, w1b, w2b, gamma_t, beta_t, s_mat)

    return out_packed.reshape(N, H, W, C)


def ref_skip_block_nhwc(x, w1, w2, gamma, beta, eps=1e-5):
    """Pure-JAX reference (matches the PyTorch forward in train mode), NHWC."""
    def conv(v, w):
        return jax.lax.conv_general_dilated(
            v, w, window_strides=(1, 1), padding=((1, 1), (1, 1)),
            dimension_numbers=("NHWC", "HWIO", "NHWC"),
            precision=jax.lax.Precision.HIGHEST)

    def bn(y):
        mean = jnp.mean(y, axis=(0, 1, 2))
        var = jnp.mean((y - mean) ** 2, axis=(0, 1, 2))
        return gamma * (y - mean) * jax.lax.rsqrt(var + eps) + beta

    y = bn(conv(x, w1))
    y = bn(conv(y, w2))
    return jnp.maximum(y + x, 0.0)


if __name__ == "__main__":
    # Small config consistent with the module (in_channels == out_channels so the
    # residual add is well-defined, skip=True, downsample_block=None).
    # W*C = 16*8 = 128 -> fully lane-dense packed layout.
    N, C, H, W = 2, 8, 16, 16
    key = jax.random.PRNGKey(0)
    kx, k1, k2, kg, kb = jax.random.split(key, 5)

    x_nchw = jax.random.normal(kx, (N, C, H, W), jnp.float32)        # NCHW like PyTorch
    w1 = 0.1 * jax.random.normal(k1, (3, 3, C, C), jnp.float32)      # conv1 (HWIO)
    w2 = 0.1 * jax.random.normal(k2, (3, 3, C, C), jnp.float32)      # conv2 (HWIO)
    gamma = 1.0 + 0.1 * jax.random.normal(kg, (C,), jnp.float32)     # BN weight
    beta = 0.05 * jax.random.normal(kb, (C,), jnp.float32)           # BN bias

    # One-time adapter for PyTorch NCHW parity; an NHWC-native model would skip this
    # (the kernel path itself uses only free reshapes for its packed layout).
    x_nhwc = jnp.transpose(x_nchw, (0, 2, 3, 1))

    out = jax.block_until_ready(skip_block_forward(x_nhwc, w1, w2, gamma, beta))
    ref = ref_skip_block_nhwc(x_nhwc, w1, w2, gamma, beta)

    assert out.shape == (N, H, W, C), out.shape
    max_err = float(jnp.max(jnp.abs(out - ref)))
    # bf16 MXU operands vs. an f32-HIGHEST reference -> small tolerance.
    assert jnp.allclose(out, ref, atol=3e-2, rtol=3e-2), max_err

    print("KERNEL_OK")
</pallas_src>

<mosaic_0001>
module attributes {stable_mosaic.version = 11 : i64} {
  func.func @skip_block_kernel(%arg0: i32, %arg1: memref<2x16x128xf32, #tpu.memory_space<vmem>>, %arg2: memref<384x128xbf16, #tpu.memory_space<vmem>>, %arg3: memref<384x128xbf16, #tpu.memory_space<vmem>>, %arg4: memref<1x128xf32, #tpu.memory_space<vmem>>, %arg5: memref<1x128xf32, #tpu.memory_space<vmem>>, %arg6: memref<128x128xf32, #tpu.memory_space<vmem>>, %arg7: memref<2x16x128xf32, #tpu.memory_space<vmem>>) attributes {dimension_semantics = [#tpu.dimension_semantics<arbitrary>], iteration_bounds = array<i64: 1>, scalar_prefetch = 0 : i64, scratch_operands = 0 : i64, tpu.core_type = #tpu.core_type<tc>, window_params = [{pipeline_mode = #tpu.pipeline_mode<synchronous>, transform_indices = @transform_0, window_bounds = array<i64: 2, 16, 128>}, {pipeline_mode = #tpu.pipeline_mode<synchronous>, transform_indices = @transform_1, window_bounds = array<i64: 384, 128>}, {pipeline_mode = #tpu.pipeline_mode<synchronous>, transform_indices = @transform_2, window_bounds = array<i64: 384, 128>}, {pipeline_mode = #tpu.pipeline_mode<synchronous>, transform_indices = @transform_3, window_bounds = array<i64: 1, 128>}, {pipeline_mode = #tpu.pipeline_mode<synchronous>, transform_indices = @transform_4, window_bounds = array<i64: 1, 128>}, {pipeline_mode = #tpu.pipeline_mode<synchronous>, transform_indices = @transform_5, window_bounds = array<i64: 128, 128>}, {pipeline_mode = #tpu.pipeline_mode<synchronous>, transform_indices = @transform_6, window_bounds = array<i64: 2, 16, 128>}]} {
    %c0 = arith.constant 0 : index
    %c0_0 = arith.constant 0 : index
    %0 = vector.load %arg4[%c0, %c0_0] : memref<1x128xf32, #tpu.memory_space<vmem>>, vector<1x128xf32>
    %c0_1 = arith.constant 0 : index
    %c0_2 = arith.constant 0 : index
    %1 = vector.load %arg5[%c0_1, %c0_2] : memref<1x128xf32, #tpu.memory_space<vmem>>, vector<1x128xf32>
    %c0_3 = arith.constant 0 : index
    %c0_4 = arith.constant 0 : index
    %2 = vector.load %arg6[%c0_3, %c0_4] : memref<128x128xf32, #tpu.memory_space<vmem>>, vector<128x128xf32>
    %c0_5 = arith.constant 0 : index
    %c0_6 = arith.constant 0 : index
    %c0_7 = arith.constant 0 : index
    %3 = vector.load %arg1[%c0_5, %c0_6, %c0_7] : memref<2x16x128xf32, #tpu.memory_space<vmem>>, vector<2x16x128xf32>
    %4 = arith.truncf %3 : vector<2x16x128xf32> to vector<2x16x128xbf16>
    %cst = arith.constant 0.000000e+00 : bf16
    %5 = vector.broadcast %cst : bf16 to vector<2x1x128xbf16>
    %6 = tpu.concatenate %5, %4, %5 in 1 : vector<2x1x128xbf16>, vector<2x16x128xbf16>, vector<2x1x128xbf16> -> vector<2x18x128xbf16>
    %7 = vector.extract_strided_slice %6 {offsets = [0, 0, 0], sizes = [2, 16, 128], strides = [1, 1, 1]} : vector<2x18x128xbf16> to vector<2x16x128xbf16>
    %8 = vector.extract_strided_slice %6 {offsets = [0, 1, 0], sizes = [2, 16, 128], strides = [1, 1, 1]} : vector<2x18x128xbf16> to vector<2x16x128xbf16>
    %9 = vector.extract_strided_slice %6 {offsets = [0, 2, 0], sizes = [2, 16, 128], strides = [1, 1, 1]} : vector<2x18x128xbf16> to vector<2x16x128xbf16>
    %10 = tpu.concatenate %7, %8, %9 in 2 : vector<2x16x128xbf16>, vector<2x16x128xbf16>, vector<2x16x128xbf16> -> vector<2x16x384xbf16>
    %11 = vector.shape_cast %10 : vector<2x16x384xbf16> to vector<32x384xbf16>
    %c0_8 = arith.constant 0 : index
    %c0_9 = arith.constant 0 : index
    %12 = vector.load %arg2[%c0_8, %c0_9] : memref<384x128xbf16, #tpu.memory_space<vmem>>, vector<384x128xbf16>
    %cst_10 = arith.constant dense<0.000000e+00> : vector<32x128xf32>
    %13 = tpu.matmul %11, %12, %cst_10 {dimension_numbers = #tpu.dot_dimension_numbers<[1], [0], [0], [1], [0, 0, 1, 1], [], []>} : vector<32x384xbf16>, vector<384x128xbf16>, vector<32x128xf32> -> vector<32x128xf32>
    %14 = arith.mulf %13, %13 : vector<32x128xf32>
    %15 = tpu.concatenate %13, %14 in 0 : vector<32x128xf32>, vector<32x128xf32> -> vector<64x128xf32>
    %cst_11 = arith.constant dense<0.000000e+00> : vector<64x128xf32>
    %16 = tpu.matmul %15, %2, %cst_11 {dimension_numbers = #tpu.dot_dimension_numbers<[1], [0], [0], [1], [0, 0, 1, 1], [], []>} : vector<64x128xf32>, vector<128x128xf32>, vector<64x128xf32> -> vector<64x128xf32>
    %17 = vector.extract_strided_slice %16 {offsets = [0, 0], sizes = [32, 128], strides = [1, 1]} : vector<64x128xf32> to vector<32x128xf32>
    %cst_12 = arith.constant dense<0.000000e+00> : vector<128xf32>
    %18 = vector.multi_reduction <add>, %17, %cst_12 [0] : vector<32x128xf32> to vector<128xf32>
    %19 = vector.shape_cast %18 : vector<128xf32> to vector<1x128xf32>
    %cst_13 = arith.constant 0.001953125 : f32
    %20 = vector.broadcast %cst_13 : f32 to vector<1x128xf32>
    %21 = arith.mulf %19, %20 : vector<1x128xf32>
    %22 = vector.extract_strided_slice %16 {offsets = [32, 0], sizes = [32, 128], strides = [1, 1]} : vector<64x128xf32> to vector<32x128xf32>
    %cst_14 = arith.constant dense<0.000000e+00> : vector<128xf32>
    %23 = vector.multi_reduction <add>, %22, %cst_14 [0] : vector<32x128xf32> to vector<128xf32>
    %24 = vector.shape_cast %23 : vector<128xf32> to vector<1x128xf32>
    %cst_15 = arith.constant 0.001953125 : f32
    %25 = vector.broadcast %cst_15 : f32 to vector<1x128xf32>
    %26 = arith.mulf %24, %25 : vector<1x128xf32>
    %27 = arith.mulf %21, %21 : vector<1x128xf32>
    %28 = arith.subf %26, %27 : vector<1x128xf32>
    %cst_16 = arith.constant 9.99999974E-6 : f32
    %29 = vector.broadcast %cst_16 : f32 to vector<1x128xf32>
    %30 = arith.addf %28, %29 : vector<1x128xf32>
    %31 = math.rsqrt %30 : vector<1x128xf32>
    %32 = arith.mulf %0, %31 : vector<1x128xf32>
    %33 = arith.mulf %21, %32 : vector<1x128xf32>
    %34 = arith.subf %1, %33 : vector<1x128xf32>
    %35 = vector.broadcast %32 : vector<1x128xf32> to vector<32x128xf32>
    %36 = arith.mulf %13, %35 : vector<32x128xf32>
    %37 = vector.broadcast %34 : vector<1x128xf32> to vector<32x128xf32>
    %38 = arith.addf %36, %37 : vector<32x128xf32>
    %39 = arith.truncf %38 : vector<32x128xf32> to vector<32x128xbf16>
    %40 = vector.shape_cast %39 : vector<32x128xbf16> to vector<2x16x128xbf16>
    %cst_17 = arith.constant 0.000000e+00 : bf16
    %41 = vector.broadcast %cst_17 : bf16 to vector<2x1x128xbf16>
    %42 = tpu.concatenate %41, %40, %41 in 1 : vector<2x1x128xbf16>, vector<2x16x128xbf16>, vector<2x1x128xbf16> -> vector<2x18x128xbf16>
    %43 = vector.extract_strided_slice %42 {offsets = [0, 0, 0], sizes = [2, 16, 128], strides = [1, 1, 1]} : vector<2x18x128xbf16> to vector<2x16x128xbf16>
    %44 = vector.extract_strided_slice %42 {offsets = [0, 1, 0], sizes = [2, 16, 128], strides = [1, 1, 1]} : vector<2x18x128xbf16> to vector<2x16x128xbf16>
    %45 = vector.extract_strided_slice %42 {offsets = [0, 2, 0], sizes = [2, 16, 128], strides = [1, 1, 1]} : vector<2x18x128xbf16> to vector<2x16x128xbf16>
    %46 = tpu.concatenate %43, %44, %45 in 2 : vector<2x16x128xbf16>, vector<2x16x128xbf16>, vector<2x16x128xbf16> -> vector<2x16x384xbf16>
    %47 = vector.shape_cast %46 : vector<2x16x384xbf16> to vector<32x384xbf16>
    %c0_18 = arith.constant 0 : index
    %c0_19 = arith.constant 0 : index
    %48 = vector.load %arg3[%c0_18, %c0_19] : memref<384x128xbf16, #tpu.memory_space<vmem>>, vector<384x128xbf16>
    %cst_20 = arith.constant dense<0.000000e+00> : vector<32x128xf32>
    %49 = tpu.matmul %47, %48, %cst_20 {dimension_numbers = #tpu.dot_dimension_numbers<[1], [0], [0], [1], [0, 0, 1, 1], [], []>} : vector<32x384xbf16>, vector<384x128xbf16>, vector<32x128xf32> -> vector<32x128xf32>
    %50 = arith.mulf %49, %49 : vector<32x128xf32>
    %51 = tpu.concatenate %49, %50 in 0 : vector<32x128xf32>, vector<32x128xf32> -> vector<64x128xf32>
    %cst_21 = arith.constant dense<0.000000e+00> : vector<64x128xf32>
    %52 = tpu.matmul %51, %2, %cst_21 {dimension_numbers = #tpu.dot_dimension_numbers<[1], [0], [0], [1], [0, 0, 1, 1], [], []>} : vector<64x128xf32>, vector<128x128xf32>, vector<64x128xf32> -> vector<64x128xf32>
    %53 = vector.extract_strided_slice %52 {offsets = [0, 0], sizes = [32, 128], strides = [1, 1]} : vector<64x128xf32> to vector<32x128xf32>
    %cst_22 = arith.constant dense<0.000000e+00> : vector<128xf32>
    %54 = vector.multi_reduction <add>, %53, %cst_22 [0] : vector<32x128xf32> to vector<128xf32>
    %55 = vector.shape_cast %54 : vector<128xf32> to vector<1x128xf32>
    %cst_23 = arith.constant 0.001953125 : f32
    %56 = vector.broadcast %cst_23 : f32 to vector<1x128xf32>
    %57 = arith.mulf %55, %56 : vector<1x128xf32>
    %58 = vector.extract_strided_slice %52 {offsets = [32, 0], sizes = [32, 128], strides = [1, 1]} : vector<64x128xf32> to vector<32x128xf32>
    %cst_24 = arith.constant dense<0.000000e+00> : vector<128xf32>
    %59 = vector.multi_reduction <add>, %58, %cst_24 [0] : vector<32x128xf32> to vector<128xf32>
    %60 = vector.shape_cast %59 : vector<128xf32> to vector<1x128xf32>
    %cst_25 = arith.constant 0.001953125 : f32
    %61 = vector.broadcast %cst_25 : f32 to vector<1x128xf32>
    %62 = arith.mulf %60, %61 : vector<1x128xf32>
    %63 = arith.mulf %57, %57 : vector<1x128xf32>
    %64 = arith.subf %62, %63 : vector<1x128xf32>
    %cst_26 = arith.constant 9.99999974E-6 : f32
    %65 = vector.broadcast %cst_26 : f32 to vector<1x128xf32>
    %66 = arith.addf %64, %65 : vector<1x128xf32>
    %67 = math.rsqrt %66 : vector<1x128xf32>
    %68 = arith.mulf %0, %67 : vector<1x128xf32>
    %69 = arith.mulf %57, %68 : vector<1x128xf32>
    %70 = arith.subf %1, %69 : vector<1x128xf32>
    %71 = vector.broadcast %68 : vector<1x128xf32> to vector<32x128xf32>
    %72 = arith.mulf %49, %71 : vector<32x128xf32>
    %73 = vector.broadcast %70 : vector<1x128xf32> to vector<32x128xf32>
    %74 = arith.addf %72, %73 : vector<32x128xf32>
    %75 = vector.shape_cast %3 : vector<2x16x128xf32> to vector<32x128xf32>
    %76 = arith.addf %74, %75 : vector<32x128xf32>
    %cst_27 = arith.constant 0.000000e+00 : f32
    %77 = vector.broadcast %cst_27 : f32 to vector<32x128xf32>
    %78 = arith.maximumf %76, %77 : vector<32x128xf32>
    %79 = vector.shape_cast %78 : vector<32x128xf32> to vector<2x16x128xf32>
    %c0_28 = arith.constant 0 : index
    %c0_29 = arith.constant 0 : index
    %c0_30 = arith.constant 0 : index
    %80 = vector.load %arg7[%c0_28, %c0_29, %c0_30] : memref<2x16x128xf32, #tpu.memory_space<vmem>>, vector<2x16x128xf32>
    tpu.vector_store %arg7[%c0_28, %c0_29, %c0_30], %79 {strides = array<i32>} : memref<2x16x128xf32, #tpu.memory_space<vmem>>, vector<2x16x128xf32>,
    return
  }
  func.func @transform_0(%arg0: i32) -> (i32, i32, i32) {
    %c0_i32 = arith.constant 0 : i32
    %c0_i32_0 = arith.constant 0 : i32
    %c0_i32_1 = arith.constant 0 : i32
    %c0_i32_2 = arith.constant 0 : i32
    return %c0_i32, %c0_i32_0, %c0_i32_1 : i32, i32, i32
  }
  func.func @transform_1(%arg0: i32) -> (i32, i32) {
    %c0_i32 = arith.constant 0 : i32
    %c0_i32_0 = arith.constant 0 : i32
    %c0_i32_1 = arith.constant 0 : i32
    return %c0_i32, %c0_i32_0 : i32, i32
  }
  func.func @transform_2(%arg0: i32) -> (i32, i32) {
    %c0_i32 = arith.constant 0 : i32
    %c0_i32_0 = arith.constant 0 : i32
    %c0_i32_1 = arith.constant 0 : i32
    return %c0_i32, %c0_i32_0 : i32, i32
  }
  func.func @transform_3(%arg0: i32) -> (i32, i32) {
    %c0_i32 = arith.constant 0 : i32
    %c0_i32_0 = arith.constant 0 : i32
    %c0_i32_1 = arith.constant 0 : i32
    return %c0_i32, %c0_i32_0 : i32, i32
  }
  func.func @transform_4(%arg0: i32) -> (i32, i32) {
    %c0_i32 = arith.constant 0 : i32
    %c0_i32_0 = arith.constant 0 : i32
    %c0_i32_1 = arith.constant 0 : i32
    return %c0_i32, %c0_i32_0 : i32, i32
  }
  func.func @transform_5(%arg0: i32) -> (i32, i32) {
    %c0_i32 = arith.constant 0 : i32
    %c0_i32_0 = arith.constant 0 : i32
    %c0_i32_1 = arith.constant 0 : i32
    return %c0_i32, %c0_i32_0 : i32, i32
  }
  func.func @transform_6(%arg0: i32) -> (i32, i32, i32) {
    %c0_i32 = arith.constant 0 : i32
    %c0_i32_0 = arith.constant 0 : i32
    %c0_i32_1 = arith.constant 0 : i32
    %c0_i32_2 = arith.constant 0 : i32
    return %c0_i32, %c0_i32_0, %c0_i32_1 : i32, i32, i32
  }
}

</mosaic_0001>

<llo_original>
// kernel: tpu_custom_call.1
$region0: #{tpu_custom_call.1}
  #allocation0 [shape = 'u32[]', space=smem, size = 0x4, offset = 0x4, fixed_abs, tag = 'smem constant byte address 0x4 - core index']
  #allocation1 [shape = 'u32[72,128]{1,0:T(1,128)}', space=vmem, size = 0x9000, scoped, tag = 'internal scratch']
  %s0 = inlined_call_operand.hbm [shape: f32[2,16,128], index: 0, kind: input, shape index: {}]
  %s1 = inlined_call_operand.hbm [shape: bf16[384,128], index: 1, kind: input, shape index: {}]
  %s2 = inlined_call_operand.hbm [shape: bf16[384,128], index: 2, kind: input, shape index: {}]
  %s3 = inlined_call_operand.vmem [shape: f32[1,128], index: 3, kind: input, shape index: {}]
  %s4 = inlined_call_operand.vmem [shape: f32[1,128], index: 4, kind: input, shape index: {}]
  %s5 = inlined_call_operand.hbm [shape: f32[128,128], index: 5, kind: input, shape index: {}]
  %s6 = inlined_call_operand.hbm [shape: f32[2,16,128], index: 6, kind: output, shape index: {}]
  %s7 = sld [smem:[#allocation0]]
  $region50: #{tpu_custom_call.1} parent=0
    _
  %s9 = ssub.s32 1, %s7
  %s10 = scalar_select 0, %s9, %s7
  $region1: #{tpu_custom_call.1} parent=0
    #allocation2 [shape = 'u8[16384]{0}', space=vmem, size = 0x4000, scoped, tag = 'input window, operand 0, single buffered']
    #allocation3 [shape = 's32[1]{0}', space=sflag, size = 0x4, scoped, tag = 'scoped memory for tpu_custom_call.1']
    #allocation4 [shape = 's32[1]{0}', space=sflag, size = 0x4, scoped, tag = 'scoped memory for tpu_custom_call.1']
    #allocation5 [shape = 'u8[98304]{0}', space=vmem, size = 0x18000, scoped, tag = 'input window, operand 1, single buffered']
    #allocation6 [shape = 's32[1]{0}', space=sflag, size = 0x4, scoped, tag = 'scoped memory for tpu_custom_call.1']
    #allocation7 [shape = 'u8[98304]{0}', space=vmem, size = 0x18000, scoped, tag = 'input window, operand 2, single buffered']
    #allocation8 [shape = 'u8[65536]{0}', space=vmem, size = 0x10000, scoped, tag = 'input window, operand 5, single buffered']
    #allocation9 [shape = 's32[1]{0}', space=sflag, size = 0x4, scoped, tag = 'scoped memory for tpu_custom_call.1']
    #allocation10 [shape = 'u8[16384]{0}', space=vmem, size = 0x4000, scoped, tag = 'output window, operand 0, single buffered']
    %11 = vsyncpa [#allocation3], 0
    %12 = vsyncpa [#allocation6], 0
    %13 = vsyncpa [#allocation9], 0
    %14 = vsyncpa [#allocation4], 0
    // Predicated region
    $region2: #{tpu_custom_call.1} parent=1 // pred_check
      _
    $region3: #{tpu_custom_call.1} parent=1 // pred_check_branch
      %16 = sbr.rel (0) target = $region5
    $region4: #{tpu_custom_call.1} parent=1 // pred_region
      %18 = vsyncadd [#allocation3], 0
      %s19 = sshll.u32 %s0, 4
      %s20 = int_to_ptr.hbm [resolvable:$true] %s19
      %s21 = sshll.u32 [#allocation2], 4
      %s22 = int_to_ptr.vmem [resolvable:$true] %s21
      %27 = dma.hbm_to_vmem [thread:$0]  %s20, 512, %s22, [#allocation3], 128, 128, 8
    $region5: #{tpu_custom_call.1} parent=1 // pred_fallthru
      _
    // Predicated region
    $region6: #{tpu_custom_call.1} parent=1 // pred_check
      _
    $region7: #{tpu_custom_call.1} parent=1 // pred_check_branch
      %29 = sbr.rel (0) target = $region9
    $region8: #{tpu_custom_call.1} parent=1 // pred_region
      %31 = vsyncadd [#allocation6], 0
      %s32 = sshll.u32 %s1, 4
      %s33 = int_to_ptr.hbm [resolvable:$true] %s32
      %s34 = sshll.u32 [#allocation5], 4
      %s35 = int_to_ptr.vmem [resolvable:$true] %s34
      %40 = dma.hbm_to_vmem [thread:$0]  %s33, 3072, %s35, [#allocation6], 64, 64, 4
    $region9: #{tpu_custom_call.1} parent=1 // pred_fallthru
      _
    // Predicated region
    $region10: #{tpu_custom_call.1} parent=1 // pred_check
      _
    $region11: #{tpu_custom_call.1} parent=1 // pred_check_branch
      %42 = sbr.rel (0) target = $region13
    $region12: #{tpu_custom_call.1} parent=1 // pred_region
      %44 = vsyncadd [#allocation6], 0
      %s45 = sshll.u32 %s2, 4
      %s46 = int_to_ptr.hbm [resolvable:$true] %s45
      %s47 = sshll.u32 [#allocation7], 4
      %s48 = int_to_ptr.vmem [resolvable:$true] %s47
      %53 = dma.hbm_to_vmem [thread:$0]  %s46, 3072, %s48, [#allocation6], 64, 64, 4
    $region13: #{tpu_custom_call.1} parent=1 // pred_fallthru
      _
    // Predicated region
    $region14: #{tpu_custom_call.1} parent=1 // pred_check
      _
    $region15: #{tpu_custom_call.1} parent=1 // pred_check_branch
      %55 = sbr.rel (0) target = $region17
    $region16: #{tpu_custom_call.1} parent=1 // pred_region
      _
    $region17: #{tpu_custom_call.1} parent=1 // pred_fallthru
      _
    // Predicated region
    $region18: #{tpu_custom_call.1} parent=1 // pred_check
      _
    $region19: #{tpu_custom_call.1} parent=1 // pred_check_branch
      %57 = sbr.rel (0) target = $region21
    $region20: #{tpu_custom_call.1} parent=1 // pred_region
      _
    $region21: #{tpu_custom_call.1} parent=1 // pred_fallthru
      _
    // Predicated region
    $region22: #{tpu_custom_call.1} parent=1 // pred_check
      _
    $region23: #{tpu_custom_call.1} parent=1 // pred_check_branch
      %59 = sbr.rel (0) target = $region25
    $region24: #{tpu_custom_call.1} parent=1 // pred_region
      %61 = vsyncadd [#allocation9], 0
      %s62 = sshll.u32 %s5, 4
      %s63 = int_to_ptr.hbm [resolvable:$true] %s62
      %s64 = sshll.u32 [#allocation8], 4
      %s65 = int_to_ptr.vmem [resolvable:$true] %s64
      %70 = dma.hbm_to_vmem [thread:$0]  %s63, 2048, %s65, [#allocation9], 128, 128, 8
    $region25: #{tpu_custom_call.1} parent=1 // pred_fallthru
      _
    // Predicated region
    $region26: #{tpu_custom_call.1} parent=1 // pred_check
      _
    $region27: #{tpu_custom_call.1} parent=1 // pred_check_branch
      %72 = sbr.rel (0) target = $region29
    $region28: #{tpu_custom_call.1} parent=1 // pred_region
      %74 = dma.done [#allocation3], 512
    $region29: #{tpu_custom_call.1} parent=1 // pred_fallthru
      _
    // Predicated region
    $region30: #{tpu_custom_call.1} parent=1 // pred_check
      _
    $region31: #{tpu_custom_call.1} parent=1 // pred_check_branch
      %76 = sbr.rel (0) target = $region33
    $region32: #{tpu_custom_call.1} parent=1 // pred_region
      %78 = dma.done [#allocation6], 3072
    $region33: #{tpu_custom_call.1} parent=1 // pred_fallthru
      _
    // Predicated region
    $region34: #{tpu_custom_call.1} parent=1 // pred_check
      _
    $region35: #{tpu_custom_call.1} parent=1 // pred_check_branch
      %80 = sbr.rel (0) target = $region37
    $region36: #{tpu_custom_call.1} parent=1 // pred_region
      %82 = dma.done [#allocation6], 3072
    $region37: #{tpu_custom_call.1} parent=1 // pred_fallthru
      _
    // Predicated region
    $region38: #{tpu_custom_call.1} parent=1 // pred_check
      _
    $region39: #{tpu_custom_call.1} parent=1 // pred_check_branch
      %84 = sbr.rel (0) target = $region41
    $region40: #{tpu_custom_call.1} parent=1 // pred_region
      %86 = dma.done [#allocation9], 2048
    $region41: #{tpu_custom_call.1} parent=1 // pred_fallthru
      _
    %v88 = vld [vmem:[%s3] sm:$0x1]
    %v89 = vld [vmem:[%s4] sm:$0x1]
    %v90 = vld [vmem:[#allocation8] sm:$0xff]
    %v91 = vld [vmem:[#allocation8 + $0x8] sm:$0xff]
    %v92 = vld [vmem:[#allocation8 + $0x10] sm:$0xff]
    %v93 = vld [vmem:[#allocation8 + $0x18] sm:$0xff]
    %v94 = vld [vmem:[#allocation8 + $0x20] sm:$0xff]
    %v95 = vld [vmem:[#allocation8 + $0x28] sm:$0xff]
    %v96 = vld [vmem:[#allocation8 + $0x30] sm:$0xff]
    %v97 = vld [vmem:[#allocation8 + $0x38] sm:$0xff]
    %v98 = vld [vmem:[#allocation8 + $0x40] sm:$0xff]
    %v99 = vld [vmem:[#allocation8 + $0x48] sm:$0xff]
    %v100 = vld [vmem:[#allocation8 + $0x50] sm:$0xff]
    %v101 = vld [vmem:[#allocation8 + $0x58] sm:$0xff]
    %v102 = vld [vmem:[#allocation8 + $0x60] sm:$0xff]
    %v103 = vld [vmem:[#allocation8 + $0x68] sm:$0xff]
    %v104 = vld [vmem:[#allocation8 + $0x70] sm:$0xff]
    %v105 = vld [vmem:[#allocation8 + $0x78] sm:$0xff]
    %v106 = vld [vmem:[#allocation2] sm:$0xff]
    %v107 = vld [vmem:[#allocation2 + $0x8] sm:$0xff]
    %v108 = vld [vmem:[#allocation2 + $0x10] sm:$0xff]
    %v109 = vld [vmem:[#allocation2 + $0x18] sm:$0xff]
    %v110 = vpack.c.bf16 %v106, %v106
    %v111 = vpack.c.bf16 %v107, %v107
    %v112 = vpack.c.bf16 %v108, %v108
    %v113 = vpack.c.bf16 %v109, %v109
    %v118 = vunpack.c.l.b16 %v110
    %v119 = vunpack.c.l.b16 %v111
    %v120 = vunpack.c.l.b16 %v112
    %v121 = vunpack.c.l.b16 %v113
    %v122 = vpack.c.b16 %v119, %v118
    %v123 = vpack.c.b16 %v121, %v120
    %v125 = vshrl.u32 %v122, 16
    %v127 = vrot.slane %v125, 7
    %v128 = vshll.u32 %v122, 16
    %v130 = vor.u32 %v127, %v128
    %v132 = vshrl.u32 %v123, 16
    %v134 = vrot.slane %v132, 7
    %v135 = vshll.u32 %v123, 16
    %v137 = vor.u32 %v134, %v135
    %vm142 = vcmask 1040384
    %vm143 = vsmask.f32 256
    %vm144 = vmand %vm142, %vm143
    %v145 = vsel %vm144, 0, %v130
    %v146 = vsel %vm144, 0, %v137
    %v147 = vsel %vm144, %v127, 0
    %v148 = vsel %vm144, %v134, 0
    %vm149 = vsmask.f32 7424
    %v151 = vshrl.u32 %v145, 16
    %v153 = vshll.u32 %v145, 16
    %v155 = vrot.slane %v153, 1
    %v156 = vor.u32 %v151, %v155
    %v158 = vshll.u32 %v147, 16
    %v160 = vrot.slane %v158, 1
    %v161 = vsel %vm149, %v156, %v160
    %v163 = vshrl.u32 %v146, 16
    %v165 = vshll.u32 %v146, 16
    %v167 = vrot.slane %v165, 1
    %v168 = vor.u32 %v163, %v167
    %v170 = vshll.u32 %v148, 16
    %v172 = vrot.slane %v170, 1
    %v173 = vsel %vm149, %v168, %v172
    %vm180 = vcmask 1046528
    %v181 = vrot.slane %v145, 1
    %v182 = vrot.slane %v147, 1
    %v183 = vsel %vm180, %v181, %v182
    %v184 = vrot.slane %v146, 1
    %v185 = vrot.slane %v148, 1
    %v186 = vsel %vm180, %v184, %v185
    %v189 = vld [vmem:[#allocation5] sm:$0xf]
    %v190 = vld [vmem:[#allocation5 + $0x4] sm:$0xf]
    %v191 = vld [vmem:[#allocation5 + $0x8] sm:$0xf]
    %v192 = vld [vmem:[#allocation5 + $0xc] sm:$0xf]
    %v193 = vld [vmem:[#allocation5 + $0x10] sm:$0xf]
    %v194 = vld [vmem:[#allocation5 + $0x14] sm:$0xf]
    %v195 = vld [vmem:[#allocation5 + $0x18] sm:$0xf]
    %v196 = vld [vmem:[#allocation5 + $0x1c] sm:$0xf]
    %v197 = vld [vmem:[#allocation5 + $0x20] sm:$0xf]
    %v198 = vld [vmem:[#allocation5 + $0x24] sm:$0xf]
    %v199 = vld [vmem:[#allocation5 + $0x28] sm:$0xf]
    %v200 = vld [vmem:[#allocation5 + $0x2c] sm:$0xf]
    %v201 = vld [vmem:[#allocation5 + $0x30] sm:$0xf]
    %v202 = vld [vmem:[#allocation5 + $0x34] sm:$0xf]
    %v203 = vld [vmem:[#allocation5 + $0x38] sm:$0xf]
    %v204 = vld [vmem:[#allocation5 + $0x3c] sm:$0xf]
    %v205 = vld [vmem:[#allocation5 + $0x40] sm:$0xf]
    %v206 = vld [vmem:[#allocation5 + $0x44] sm:$0xf]
    %v207 = vld [vmem:[#allocation5 + $0x48] sm:$0xf]
    %v208 = vld [vmem:[#allocation5 + $0x4c] sm:$0xf]
    %v209 = vld [vmem:[#allocation5 + $0x50] sm:$0xf]
    %v210 = vld [vmem:[#allocation5 + $0x54] sm:$0xf]
    %v211 = vld [vmem:[#allocation5 + $0x58] sm:$0xf]
    %v212 = vld [vmem:[#allocation5 + $0x5c] sm:$0xf]
    %v213 = vld [vmem:[#allocation5 + $0x60] sm:$0xf]
    %v214 = vld [vmem:[#allocation5 + $0x64] sm:$0xf]
    %v215 = vld [vmem:[#allocation5 + $0x68] sm:$0xf]
    %v216 = vld [vmem:[#allocation5 + $0x6c] sm:$0xf]
    %v217 = vld [vmem:[#allocation5 + $0x70] sm:$0xf]
    %v218 = vld [vmem:[#allocation5 + $0x74] sm:$0xf]
    %v219 = vld [vmem:[#allocation5 + $0x78] sm:$0xf]
    %v220 = vld [vmem:[#allocation5 + $0x7c] sm:$0xf]
    %v221 = vld [vmem:[#allocation5 + $0x80] sm:$0xf]
    %v222 = vld [vmem:[#allocation5 + $0x84] sm:$0xf]
    %v223 = vld [vmem:[#allocation5 + $0x88] sm:$0xf]
    %v224 = vld [vmem:[#allocation5 + $0x8c] sm:$0xf]
    %v225 = vld [vmem:[#allocation5 + $0x90] sm:$0xf]
    %v226 = vld [vmem:[#allocation5 + $0x94] sm:$0xf]
    %v227 = vld [vmem:[#allocation5 + $0x98] sm:$0xf]
    %v228 = vld [vmem:[#allocation5 + $0x9c] sm:$0xf]
    %v229 = vld [vmem:[#allocation5 + $0xa0] sm:$0xf]
    %v230 = vld [vmem:[#allocation5 + $0xa4] sm:$0xf]
    %v231 = vld [vmem:[#allocation5 + $0xa8] sm:$0xf]
    %v232 = vld [vmem:[#allocation5 + $0xac] sm:$0xf]
    %v233 = vld [vmem:[#allocation5 + $0xb0] sm:$0xf]
    %v234 = vld [vmem:[#allocation5 + $0xb4] sm:$0xf]
    %v235 = vld [vmem:[#allocation5 + $0xb8] sm:$0xf]
    %v236 = vld [vmem:[#allocation5 + $0xbc] sm:$0xf]
    %v285 = vunpack.c.l.b16 %v189
    %v286 = vunpack.c.l.b16 %v190
    %v287 = vunpack.c.l.b16 %v191
    %v288 = vunpack.c.l.b16 %v192
    %v289 = vunpack.c.l.b16 %v193
    %v290 = vunpack.c.l.b16 %v194
    %v291 = vunpack.c.l.b16 %v195
    %v292 = vunpack.c.l.b16 %v196
    %v293 = vunpack.c.l.b16 %v197
    %v294 = vunpack.c.l.b16 %v198
    %v295 = vunpack.c.l.b16 %v199
    %v296 = vunpack.c.l.b16 %v200
    %v297 = vunpack.c.l.b16 %v201
    %v298 = vunpack.c.l.b16 %v202
    %v299 = vunpack.c.l.b16 %v203
    %v300 = vunpack.c.l.b16 %v204
    %v301 = vunpack.c.l.b16 %v205
    %v302 = vunpack.c.l.b16 %v206
    %v303 = vunpack.c.l.b16 %v207
    %v304 = vunpack.c.l.b16 %v208
    %v305 = vunpack.c.l.b16 %v209
    %v306 = vunpack.c.l.b16 %v210
    %v307 = vunpack.c.l.b16 %v211
    %v308 = vunpack.c.l.b16 %v212
    %v309 = vunpack.c.l.b16 %v213
    %v310 = vunpack.c.l.b16 %v214
    %v311 = vunpack.c.l.b16 %v215
    %v312 = vunpack.c.l.b16 %v216
    %v313 = vunpack.c.l.b16 %v217
    %v314 = vunpack.c.l.b16 %v218
    %v315 = vunpack.c.l.b16 %v219
    %v316 = vunpack.c.l.b16 %v220
    %v317 = vunpack.c.l.b16 %v221
    %v318 = vunpack.c.l.b16 %v222
    %v319 = vunpack.c.l.b16 %v223
    %v320 = vunpack.c.l.b16 %v224
    %v321 = vunpack.c.l.b16 %v225
    %v322 = vunpack.c.l.b16 %v226
    %v323 = vunpack.c.l.b16 %v227
    %v324 = vunpack.c.l.b16 %v228
    %v325 = vunpack.c.l.b16 %v229
    %v326 = vunpack.c.l.b16 %v230
    %v327 = vunpack.c.l.b16 %v231
    %v328 = vunpack.c.l.b16 %v232
    %v329 = vunpack.c.l.b16 %v233
    %v330 = vunpack.c.l.b16 %v234
    %v331 = vunpack.c.l.b16 %v235
    %v332 = vunpack.c.l.b16 %v236
    %v333 = vpack.c.b16 %v286, %v285
    %v334 = vpack.c.b16 %v288, %v287
    %v335 = vpack.c.b16 %v290, %v289
    %v336 = vpack.c.b16 %v292, %v291
    %v337 = vpack.c.b16 %v294, %v293
    %v338 = vpack.c.b16 %v296, %v295
    %v339 = vpack.c.b16 %v298, %v297
    %v340 = vpack.c.b16 %v300, %v299
    %v341 = vpack.c.b16 %v302, %v301
    %v342 = vpack.c.b16 %v304, %v303
    %v343 = vpack.c.b16 %v306, %v305
    %v344 = vpack.c.b16 %v308, %v307
    %v345 = vpack.c.b16 %v310, %v309
    %v346 = vpack.c.b16 %v312, %v311
    %v347 = vpack.c.b16 %v314, %v313
    %v348 = vpack.c.b16 %v316, %v315
    %v349 = vpack.c.b16 %v318, %v317
    %v350 = vpack.c.b16 %v320, %v319
    %v351 = vpack.c.b16 %v322, %v321
    %v352 = vpack.c.b16 %v324, %v323
    %v353 = vpack.c.b16 %v326, %v325
    %v354 = vpack.c.b16 %v328, %v327
    %v355 = vpack.c.b16 %v330, %v329
    %v356 = vpack.c.b16 %v332, %v331
    %381 = vmatpush.bf16.msra.mxu0 %v340
    %382 = vmatpush.bf16.msra.mxu0 %v339
    %383 = vmatpush.bf16.msra.mxu0 %v338
    %384 = vmatpush.bf16.msra.mxu0 %v337
    %385 = vmatpush.bf16.msra.mxu0 %v336
    %386 = vmatpush.bf16.msra.mxu0 %v335
    %387 = vmatpush.bf16.msra.mxu0 %v334
    %388 = vmatpush.bf16.msra.mxu0 %v333
    %389 = vmatmul.bf16.gmra.mxu0 %v145
    %v390 = vpop.f32.mrf.mxu0
    %v391 = vadd.f32 0.0, %v390
    %v392 = vpop.f32.mrf.mxu0
    %v393 = vadd.f32 0.0, %v392
    %394 = vmatmul.bf16.gmra.mxu0 %v146
    %v395 = vpop.f32.mrf.mxu0
    %v396 = vadd.f32 0.0, %v395
    %v397 = vpop.f32.mrf.mxu0
    %v398 = vadd.f32 0.0, %v397
    %399 = vdwg.mxu0
    %400 = vmatpush.bf16.msra.mxu0 %v348
    %401 = vmatpush.bf16.msra.mxu0 %v347
    %402 = vmatpush.bf16.msra.mxu0 %v346
    %403 = vmatpush.bf16.msra.mxu0 %v345
    %404 = vmatpush.bf16.msra.mxu0 %v344
    %405 = vmatpush.bf16.msra.mxu0 %v343
    %406 = vmatpush.bf16.msra.mxu0 %v342
    %407 = vmatpush.bf16.msra.mxu0 %v341
    %408 = vmatmul.bf16.gmra.mxu0 %v161
    %v409 = vpop.f32.mrf.mxu0
    %v410 = vadd.f32 %v391, %v409
    %v411 = vpop.f32.mrf.mxu0
    %v412 = vadd.f32 %v393, %v411
    %413 = vmatmul.bf16.gmra.mxu0 %v173
    %v414 = vpop.f32.mrf.mxu0
    %v415 = vadd.f32 %v396, %v414
    %v416 = vpop.f32.mrf.mxu0
    %v417 = vadd.f32 %v398, %v416
    %418 = vdwg.mxu0
    %419 = vmatpush.bf16.msra.mxu0 %v356
    %420 = vmatpush.bf16.msra.mxu0 %v355
    %421 = vmatpush.bf16.msra.mxu0 %v354
    %422 = vmatpush.bf16.msra.mxu0 %v353
    %423 = vmatpush.bf16.msra.mxu0 %v352
    %424 = vmatpush.bf16.msra.mxu0 %v351
    %425 = vmatpush.bf16.msra.mxu0 %v350
    %426 = vmatpush.bf16.msra.mxu0 %v349
    %427 = vmatmul.bf16.gmra.mxu0 %v183
    %v428 = vpop.f32.mrf.mxu0
    %v429 = vadd.f32 %v410, %v428
    %v430 = vpop.f32.mrf.mxu0
    %v431 = vadd.f32 %v412, %v430
    %432 = vmatmul.bf16.gmra.mxu0 %v186
    %v433 = vpop.f32.mrf.mxu0
    %v434 = vadd.f32 %v415, %v433
    %v435 = vpop.f32.mrf.mxu0
    %v436 = vadd.f32 %v417, %v435
    %437 = vdwg.mxu0
    %v438 = vmul.f32 %v429, %v429
    %v439 = vmul.f32 %v431, %v431
    %v440 = vmul.f32 %v434, %v434
    %v441 = vmul.f32 %v436, %v436
    %442 = vmatpush.msra.mxu0 %v105
    %443 = vmatpush.msra.mxu0 %v104
    %444 = vmatpush.msra.mxu0 %v103
    %445 = vmatpush.msra.mxu0 %v102
    %446 = vmatpush.msra.mxu0 %v101
    %447 = vmatpush.msra.mxu0 %v100
    %448 = vmatpush.msra.mxu0 %v99
    %449 = vmatpush.msra.mxu0 %v98
    %450 = vmatpush.msra.mxu0 %v97
    %451 = vmatpush.msra.mxu0 %v96
    %452 = vmatpush.msra.mxu0 %v95
    %453 = vmatpush.msra.mxu0 %v94
    %454 = vmatpush.msra.mxu0 %v93
    %455 = vmatpush.msra.mxu0 %v92
    %456 = vmatpush.msra.mxu0 %v91
    %457 = vmatpush.msra.mxu0 %v90
    %458 = vmatmul.f32.gmra.mxu0 %v429
    %v459 = vpop.f32.mrf.mxu0
    %v460 = vadd.f32 0.0, %v459
    %461 = vmatmul.f32.gmra.mxu0 %v431
    %v462 = vpop.f32.mrf.mxu0
    %v463 = vadd.f32 0.0, %v462
    %464 = vmatmul.f32.gmra.mxu0 %v434
    %v465 = vpop.f32.mrf.mxu0
    %v466 = vadd.f32 0.0, %v465
    %467 = vmatmul.f32.gmra.mxu0 %v436
    %v468 = vpop.f32.mrf.mxu0
    %v469 = vadd.f32 0.0, %v468
    %470 = vmatmul.f32.gmra.mxu0 %v438
    %v471 = vpop.f32.mrf.mxu0
    %v472 = vadd.f32 0.0, %v471
    %473 = vmatmul.f32.gmra.mxu0 %v439
    %v474 = vpop.f32.mrf.mxu0
    %v475 = vadd.f32 0.0, %v474
    %476 = vmatmul.f32.gmra.mxu0 %v440
    %v477 = vpop.f32.mrf.mxu0
    %v478 = vadd.f32 0.0, %v477
    %479 = vmatmul.f32.gmra.mxu0 %v441
    %v480 = vpop.f32.mrf.mxu0
    %v481 = vadd.f32 0.0, %v480
    %482 = vdwg.mxu0
    %v483 = vadd.f32 %v460, %v463
    %v484 = vadd.f32 %v483, %v466
    %v485 = vadd.f32 %v484, %v469
    %v486 = vrot.slane %v485, 4
    %v487 = vadd.f32 %v485, %v486
    %v488 = vrot.slane %v487, 2
    %v489 = vadd.f32 %v487, %v488
    %v490 = vrot.slane %v489, 1
    %v491 = vadd.f32 %v489, %v490
    %v492 = vmul.f32 %v491, 0.001953125
    %v493 = vadd.f32 %v472, %v475
    %v494 = vadd.f32 %v493, %v478
    %v495 = vadd.f32 %v494, %v481
    %v496 = vrot.slane %v495, 4
    %v497 = vadd.f32 %v495, %v496
    %v498 = vrot.slane %v497, 2
    %v499 = vadd.f32 %v497, %v498
    %v500 = vrot.slane %v499, 1
    %v501 = vadd.f32 %v499, %v500
    %v502 = vmul.f32 %v501, 0.001953125
    %v503 = vmul.f32 %v492, %v492
    %v504 = vsub.f32 %v502, %v503
    %v505 = vadd.f32 %v504, 1e-05
    %v506 = vrsqrt.pop %v505
    %v507 = vmul.f32 %v506, %v505
    %v508 = vmul.f32 %v507, %v506
    %v509 = vmul.f32 0.5, %v508
    %v510 = vsub.f32 1.5, %v509
    %v511 = vmul.f32 %v506, %v510
    %vm512 = vweird.f32 %v505
    %vm513 = vweird.f32 %v506
    %vm514 = vmor %vm512, %vm513
    %v515 = vsel %vm514, %v506, %v511
    %v516 = vmul.f32 %v88, %v515
    %v517 = vmul.f32 %v492, %v516
    %v518 = vsub.f32 %v89, %v517
    %v520 = vperm.slane %v516, 0
    %v522 = vmul.f32 %v429, %v520
    %v523 = vmul.f32 %v431, %v520
    %v524 = vmul.f32 %v434, %v520
    %v525 = vmul.f32 %v436, %v520
    %v527 = vperm.slane %v518, 0
    %v529 = vadd.f32 %v522, %v527
    %v530 = vadd.f32 %v523, %v527
    %v531 = vadd.f32 %v524, %v527
    %v532 = vadd.f32 %v525, %v527
    %v533 = vpack.c.bf16 %v529, %v529
    %v534 = vpack.c.bf16 %v530, %v530
    %v535 = vpack.c.bf16 %v531, %v531
    %v536 = vpack.c.bf16 %v532, %v532
    %v541 = vunpack.c.l.b16 %v533
    %v542 = vunpack.c.l.b16 %v534
    %v543 = vunpack.c.l.b16 %v535
    %v544 = vunpack.c.l.b16 %v536
    %v545 = vpack.c.b16 %v542, %v541
    %v546 = vpack.c.b16 %v544, %v543
    %v548 = vshrl.u32 %v545, 16
    %v550 = vrot.slane %v548, 7
    %v551 = vshll.u32 %v545, 16
    %v553 = vor.u32 %v550, %v551
    %v555 = vshrl.u32 %v546, 16
    %v557 = vrot.slane %v555, 7
    %v558 = vshll.u32 %v546, 16
    %v560 = vor.u32 %v557, %v558
    %v565 = vsel %vm144, 0, %v553
    %v566 = vsel %vm144, 0, %v560
    %v567 = vsel %vm144, %v550, 0
    %v568 = vsel %vm144, %v557, 0
    %v570 = vshrl.u32 %v565, 16
    %v572 = vshll.u32 %v565, 16
    %v574 = vrot.slane %v572, 1
    %v575 = vor.u32 %v570, %v574
    %v577 = vshll.u32 %v567, 16
    %v579 = vrot.slane %v577, 1
    %v580 = vsel %vm149, %v575, %v579
    %v582 = vshrl.u32 %v566, 16
    %v584 = vshll.u32 %v566, 16
    %v586 = vrot.slane %v584, 1
    %v587 = vor.u32 %v582, %v586
    %v589 = vshll.u32 %v568, 16
    %v591 = vrot.slane %v589, 1
    %v592 = vsel %vm149, %v587, %v591
    %v599 = vrot.slane %v565, 1
    %v600 = vrot.slane %v567, 1
    %v601 = vsel %vm180, %v599, %v600
    %v602 = vrot.slane %v566, 1
    %v603 = vrot.slane %v568, 1
    %v604 = vsel %vm180, %v602, %v603
    %v607 = vld [vmem:[#allocation7] sm:$0xf]
    %v608 = vld [vmem:[#allocation7 + $0x4] sm:$0xf]
    %v609 = vld [vmem:[#allocation7 + $0x8] sm:$0xf]
    %v610 = vld [vmem:[#allocation7 + $0xc] sm:$0xf]
    %v611 = vld [vmem:[#allocation7 + $0x10] sm:$0xf]
    %v612 = vld [vmem:[#allocation7 + $0x14] sm:$0xf]
    %v613 = vld [vmem:[#allocation7 + $0x18] sm:$0xf]
    %v614 = vld [vmem:[#allocation7 + $0x1c] sm:$0xf]
    %v615 = vld [vmem:[#allocation7 + $0x20] sm:$0xf]
    %v616 = vld [vmem:[#allocation7 + $0x24] sm:$0xf]
    %v617 = vld [vmem:[#allocation7 + $0x28] sm:$0xf]
    %v618 = vld [vmem:[#allocation7 + $0x2c] sm:$0xf]
    %v619 = vld [vmem:[#allocation7 + $0x30] sm:$0xf]
    %v620 = vld [vmem:[#allocation7 + $0x34] sm:$0xf]
    %v621 = vld [vmem:[#allocation7 + $0x38] sm:$0xf]
    %v622 = vld [vmem:[#allocation7 + $0x3c] sm:$0xf]
    %v623 = vld [vmem:[#allocation7 + $0x40] sm:$0xf]
    %v624 = vld [vmem:[#allocation7 + $0x44] sm:$0xf]
    %v625 = vld [vmem:[#allocation7 + $0x48] sm:$0xf]
    %v626 = vld [vmem:[#allocation7 + $0x4c] sm:$0xf]
    %v627 = vld [vmem:[#allocation7 + $0x50] sm:$0xf]
    %v628 = vld [vmem:[#allocation7 + $0x54] sm:$0xf]
    %v629 = vld [vmem:[#allocation7 + $0x58] sm:$0xf]
    %v630 = vld [vmem:[#allocation7 + $0x5c] sm:$0xf]
    %v631 = vld [vmem:[#allocation7 + $0x60] sm:$0xf]
    %v632 = vld [vmem:[#allocation7 + $0x64] sm:$0xf]
    %v633 = vld [vmem:[#allocation7 + $0x68] sm:$0xf]
    %v634 = vld [vmem:[#allocation7 + $0x6c] sm:$0xf]
    %v635 = vld [vmem:[#allocation7 + $0x70] sm:$0xf]
    %v636 = vld [vmem:[#allocation7 + $0x74] sm:$0xf]
    %v637 = vld [vmem:[#allocation7 + $0x78] sm:$0xf]
    %v638 = vld [vmem:[#allocation7 + $0x7c] sm:$0xf]
    %v639 = vld [vmem:[#allocation7 + $0x80] sm:$0xf]
    %v640 = vld [vmem:[#allocation7 + $0x84] sm:$0xf]
    %v641 = vld [vmem:[#allocation7 + $0x88] sm:$0xf]
    %v642 = vld [vmem:[#allocation7 + $0x8c] sm:$0xf]
    %v643 = vld [vmem:[#allocation7 + $0x90] sm:$0xf]
    %v644 = vld [vmem:[#allocation7 + $0x94] sm:$0xf]
    %v645 = vld [vmem:[#allocation7 + $0x98] sm:$0xf]
    %v646 = vld [vmem:[#allocation7 + $0x9c] sm:$0xf]
    %v647 = vld [vmem:[#allocation7 + $0xa0] sm:$0xf]
    %v648 = vld [vmem:[#allocation7 + $0xa4] sm:$0xf]
    %v649 = vld [vmem:[#allocation7 + $0xa8] sm:$0xf]
    %v650 = vld [vmem:[#allocation7 + $0xac] sm:$0xf]
    %v651 = vld [vmem:[#allocation7 + $0xb0] sm:$0xf]
    %v652 = vld [vmem:[#allocation7 + $0xb4] sm:$0xf]
    %v653 = vld [vmem:[#allocation7 + $0xb8] sm:$0xf]
    %v654 = vld [vmem:[#allocation7 + $0xbc] sm:$0xf]
    %v703 = vunpack.c.l.b16 %v607
    %v704 = vunpack.c.l.b16 %v608
    %v705 = vunpack.c.l.b16 %v609
    %v706 = vunpack.c.l.b16 %v610
    %v707 = vunpack.c.l.b16 %v611
    %v708 = vunpack.c.l.b16 %v612
    %v709 = vunpack.c.l.b16 %v613
    %v710 = vunpack.c.l.b16 %v614
    %v711 = vunpack.c.l.b16 %v615
    %v712 = vunpack.c.l.b16 %v616
    %v713 = vunpack.c.l.b16 %v617
    %v714 = vunpack.c.l.b16 %v618
    %v715 = vunpack.c.l.b16 %v619
    %v716 = vunpack.c.l.b16 %v620
    %v717 = vunpack.c.l.b16 %v621
    %v718 = vunpack.c.l.b16 %v622
    %v719 = vunpack.c.l.b16 %v623
    %v720 = vunpack.c.l.b16 %v624
    %v721 = vunpack.c.l.b16 %v625
    %v722 = vunpack.c.l.b16 %v626
    %v723 = vunpack.c.l.b16 %v627
    %v724 = vunpack.c.l.b16 %v628
    %v725 = vunpack.c.l.b16 %v629
    %v726 = vunpack.c.l.b16 %v630
    %v727 = vunpack.c.l.b16 %v631
    %v728 = vunpack.c.l.b16 %v632
    %v729 = vunpack.c.l.b16 %v633
    %v730 = vunpack.c.l.b16 %v634
    %v731 = vunpack.c.l.b16 %v635
    %v732 = vunpack.c.l.b16 %v636
    %v733 = vunpack.c.l.b16 %v637
    %v734 = vunpack.c.l.b16 %v638
    %v735 = vunpack.c.l.b16 %v639
    %v736 = vunpack.c.l.b16 %v640
    %v737 = vunpack.c.l.b16 %v641
    %v738 = vunpack.c.l.b16 %v642
    %v739 = vunpack.c.l.b16 %v643
    %v740 = vunpack.c.l.b16 %v644
    %v741 = vunpack.c.l.b16 %v645
    %v742 = vunpack.c.l.b16 %v646
    %v743 = vunpack.c.l.b16 %v647
    %v744 = vunpack.c.l.b16 %v648
    %v745 = vunpack.c.l.b16 %v649
    %v746 = vunpack.c.l.b16 %v650
    %v747 = vunpack.c.l.b16 %v651
    %v748 = vunpack.c.l.b16 %v652
    %v749 = vunpack.c.l.b16 %v653
    %v750 = vunpack.c.l.b16 %v654
    %v751 = vpack.c.b16 %v704, %v703
    %v752 = vpack.c.b16 %v706, %v705
    %v753 = vpack.c.b16 %v708, %v707
    %v754 = vpack.c.b16 %v710, %v709
    %v755 = vpack.c.b16 %v712, %v711
    %v756 = vpack.c.b16 %v714, %v713
    %v757 = vpack.c.b16 %v716, %v715
    %v758 = vpack.c.b16 %v718, %v717
    %v759 = vpack.c.b16 %v720, %v719
    %v760 = vpack.c.b16 %v722, %v721
    %v761 = vpack.c.b16 %v724, %v723
    %v762 = vpack.c.b16 %v726, %v725
    %v763 = vpack.c.b16 %v728, %v727
    %v764 = vpack.c.b16 %v730, %v729
    %v765 = vpack.c.b16 %v732, %v731
    %v766 = vpack.c.b16 %v734, %v733
    %v767 = vpack.c.b16 %v736, %v735
    %v768 = vpack.c.b16 %v738, %v737
    %v769 = vpack.c.b16 %v740, %v739
    %v770 = vpack.c.b16 %v742, %v741
    %v771 = vpack.c.b16 %v744, %v743
    %v772 = vpack.c.b16 %v746, %v745
    %v773 = vpack.c.b16 %v748, %v747
    %v774 = vpack.c.b16 %v750, %v749
    %799 = vmatpush.bf16.msra.mxu0 %v758
    %800 = vmatpush.bf16.msra.mxu0 %v757
    %801 = vmatpush.bf16.msra.mxu0 %v756
    %802 = vmatpush.bf16.msra.mxu0 %v755
    %803 = vmatpush.bf16.msra.mxu0 %v754
    %804 = vmatpush.bf16.msra.mxu0 %v753
    %805 = vmatpush.bf16.msra.mxu0 %v752
    %806 = vmatpush.bf16.msra.mxu0 %v751
    %807 = vmatmul.bf16.gmra.mxu0 %v565
    %v808 = vpop.f32.mrf.mxu0
    %v809 = vadd.f32 0.0, %v808
    %v810 = vpop.f32.mrf.mxu0
    %v811 = vadd.f32 0.0, %v810
    %812 = vmatmul.bf16.gmra.mxu0 %v566
    %v813 = vpop.f32.mrf.mxu0
    %v814 = vadd.f32 0.0, %v813
    %v815 = vpop.f32.mrf.mxu0
    %v816 = vadd.f32 0.0, %v815
    %817 = vdwg.mxu0
    %818 = vmatpush.bf16.msra.mxu0 %v766
    %819 = vmatpush.bf16.msra.mxu0 %v765
    %820 = vmatpush.bf16.msra.mxu0 %v764
    %821 = vmatpush.bf16.msra.mxu0 %v763
    %822 = vmatpush.bf16.msra.mxu0 %v762
    %823 = vmatpush.bf16.msra.mxu0 %v761
    %824 = vmatpush.bf16.msra.mxu0 %v760
    %825 = vmatpush.bf16.msra.mxu0 %v759
    %826 = vmatmul.bf16.gmra.mxu0 %v580
    %v827 = vpop.f32.mrf.mxu0
    %v828 = vadd.f32 %v809, %v827
    %v829 = vpop.f32.mrf.mxu0
    %v830 = vadd.f32 %v811, %v829
    %831 = vmatmul.bf16.gmra.mxu0 %v592
    %v832 = vpop.f32.mrf.mxu0
    %v833 = vadd.f32 %v814, %v832
    %v834 = vpop.f32.mrf.mxu0
    %v835 = vadd.f32 %v816, %v834
    %836 = vdwg.mxu0
    %837 = vmatpush.bf16.msra.mxu0 %v774
    %838 = vmatpush.bf16.msra.mxu0 %v773
    %839 = vmatpush.bf16.msra.mxu0 %v772
    %840 = vmatpush.bf16.msra.mxu0 %v771
    %841 = vmatpush.bf16.msra.mxu0 %v770
    %842 = vmatpush.bf16.msra.mxu0 %v769
    %843 = vmatpush.bf16.msra.mxu0 %v768
    %844 = vmatpush.bf16.msra.mxu0 %v767
    %845 = vmatmul.bf16.gmra.mxu0 %v601
    %v846 = vpop.f32.mrf.mxu0
    %v847 = vadd.f32 %v828, %v846
    %v848 = vpop.f32.mrf.mxu0
    %v849 = vadd.f32 %v830, %v848
    %850 = vmatmul.bf16.gmra.mxu0 %v604
    %v851 = vpop.f32.mrf.mxu0
    %v852 = vadd.f32 %v833, %v851
    %v853 = vpop.f32.mrf.mxu0
    %v854 = vadd.f32 %v835, %v853
    %855 = vdwg.mxu0
    %v856 = vmul.f32 %v847, %v847
    %v857 = vmul.f32 %v849, %v849
    %v858 = vmul.f32 %v852, %v852
    %v859 = vmul.f32 %v854, %v854
    %860 = vmatpush.msra.mxu0 %v105
    %861 = vmatpush.msra.mxu0 %v104
    %862 = vmatpush.msra.mxu0 %v103
    %863 = vmatpush.msra.mxu0 %v102
    %864 = vmatpush.msra.mxu0 %v101
    %865 = vmatpush.msra.mxu0 %v100
    %866 = vmatpush.msra.mxu0 %v99
    %867 = vmatpush.msra.mxu0 %v98
    %868 = vmatpush.msra.mxu0 %v97
    %869 = vmatpush.msra.mxu0 %v96
    %870 = vmatpush.msra.mxu0 %v95
    %871 = vmatpush.msra.mxu0 %v94
    %872 = vmatpush.msra.mxu0 %v93
    %873 = vmatpush.msra.mxu0 %v92
    %874 = vmatpush.msra.mxu0 %v91
    %875 = vmatpush.msra.mxu0 %v90
    %876 = vmatmul.f32.gmra.mxu0 %v847
    %v877 = vpop.f32.mrf.mxu0
    %v878 = vadd.f32 0.0, %v877
    %879 = vmatmul.f32.gmra.mxu0 %v849
    %v880 = vpop.f32.mrf.mxu0
    %v881 = vadd.f32 0.0, %v880
    %882 = vmatmul.f32.gmra.mxu0 %v852
    %v883 = vpop.f32.mrf.mxu0
    %v884 = vadd.f32 0.0, %v883
    %885 = vmatmul.f32.gmra.mxu0 %v854
    %v886 = vpop.f32.mrf.mxu0
    %v887 = vadd.f32 0.0, %v886
    %888 = vmatmul.f32.gmra.mxu0 %v856
    %v889 = vpop.f32.mrf.mxu0
    %v890 = vadd.f32 0.0, %v889
    %891 = vmatmul.f32.gmra.mxu0 %v857
    %v892 = vpop.f32.mrf.mxu0
    %v893 = vadd.f32 0.0, %v892
    %894 = vmatmul.f32.gmra.mxu0 %v858
    %v895 = vpop.f32.mrf.mxu0
    %v896 = vadd.f32 0.0, %v895
    %897 = vmatmul.f32.gmra.mxu0 %v859
    %v898 = vpop.f32.mrf.mxu0
    %v899 = vadd.f32 0.0, %v898
    %900 = vdwg.mxu0
    %v901 = vadd.f32 %v878, %v881
    %v902 = vadd.f32 %v901, %v884
    %v903 = vadd.f32 %v902, %v887
    %v904 = vrot.slane %v903, 4
    %v905 = vadd.f32 %v903, %v904
    %v906 = vrot.slane %v905, 2
    %v907 = vadd.f32 %v905, %v906
    %v908 = vrot.slane %v907, 1
    %v909 = vadd.f32 %v907, %v908
    %v910 = vmul.f32 %v909, 0.001953125
    %v911 = vadd.f32 %v890, %v893
    %v912 = vadd.f32 %v911, %v896
    %v913 = vadd.f32 %v912, %v899
    %v914 = vrot.slane %v913, 4
    %v915 = vadd.f32 %v913, %v914
    %v916 = vrot.slane %v915, 2
    %v917 = vadd.f32 %v915, %v916
    %v918 = vrot.slane %v917, 1
    %v919 = vadd.f32 %v917, %v918
    %v920 = vmul.f32 %v919, 0.001953125
    %v921 = vmul.f32 %v910, %v910
    %v922 = vsub.f32 %v920, %v921
    %v923 = vadd.f32 %v922, 1e-05
    %v924 = vrsqrt.pop %v923
    %v925 = vmul.f32 %v924, %v923
    %v926 = vmul.f32 %v925, %v924
    %v927 = vmul.f32 0.5, %v926
    %v928 = vsub.f32 1.5, %v927
    %v929 = vmul.f32 %v924, %v928
    %vm930 = vweird.f32 %v923
    %vm931 = vweird.f32 %v924
    %vm932 = vmor %vm930, %vm931
    %v933 = vsel %vm932, %v924, %v929
    %v934 = vmul.f32 %v88, %v933
    %v935 = vmul.f32 %v910, %v934
    %v936 = vsub.f32 %v89, %v935
    %v938 = vperm.slane %v934, 0
    %v940 = vmul.f32 %v847, %v938
    %v941 = vmul.f32 %v849, %v938
    %v942 = vmul.f32 %v852, %v938
    %v943 = vmul.f32 %v854, %v938
    %v945 = vperm.slane %v936, 0
    %v947 = vadd.f32 %v940, %v945
    %v948 = vadd.f32 %v941, %v945
    %v949 = vadd.f32 %v942, %v945
    %v950 = vadd.f32 %v943, %v945
    %v951 = vadd.f32 %v947, %v106
    %v952 = vadd.f32 %v948, %v107
    %v953 = vadd.f32 %v949, %v108
    %v954 = vadd.f32 %v950, %v109
    %v955 = vmax.f32 %v951, 0.0
    %v956 = vmax.f32 %v952, 0.0
    %v957 = vmax.f32 %v953, 0.0
    %v958 = vmax.f32 %v954, 0.0
    %959 = vst [vmem:[#allocation10] sm:$0xff] %v955
    %960 = vst [vmem:[#allocation10 + $0x8] sm:$0xff] %v956
    %961 = vst [vmem:[#allocation10 + $0x10] sm:$0xff] %v957
    %962 = vst [vmem:[#allocation10 + $0x18] sm:$0xff] %v958
    // Predicated region
    $region42: #{tpu_custom_call.1} parent=1 // pred_check
      _
    $region43: #{tpu_custom_call.1} parent=1 // pred_check_branch
      %964 = sbr.rel (0) target = $region45
    $region44: #{tpu_custom_call.1} parent=1 // pred_region
      %966 = vsyncadd [#allocation4], 0
      %s967 = sshll.u32 [#allocation10], 4
      %s968 = int_to_ptr.vmem [resolvable:$true] %s967
      %s969 = sshll.u32 %s6, 4
      %s970 = int_to_ptr.hbm [resolvable:$true] %s969
      %975 = dma.vmem_to_hbm [thread:$0]  %s968, 512, %s970, [#allocation4], 128, 128, 8
    $region45: #{tpu_custom_call.1} parent=1 // pred_fallthru
      _
    // Predicated region
    $region46: #{tpu_custom_call.1} parent=1 // pred_check
      _
    $region47: #{tpu_custom_call.1} parent=1 // pred_check_branch
      %977 = sbr.rel (0) target = $region49
    $region48: #{tpu_custom_call.1} parent=1 // pred_region
      %979 = dma.done [#allocation4], 512
    $region49: #{tpu_custom_call.1} parent=1 // pred_fallthru
      _
    %980 = vsyncpa [#allocation3], 1
    %981 = vsyncpa [#allocation6], 1
    %982 = vsyncpa [#allocation9], 1
    %983 = vsyncpa [#allocation4], 1

</llo_original>
